<compile_context>
chip_gen: v6e
topology: v6e:2x2x1
jax: 0.10.0
libtpu: 0.0.40
codegen_flags: <defaults>
</compile_context>

<pallas_src>
import functools

import jax
import jax.numpy as jnp
from jax.experimental import pallas as pl
from jax.experimental.pallas import tpu as pltpu

GAMMA = 2.0  # matches FocalLoss(gamma=2)


def _round_up(n, m):
    return (n + m - 1) // m * m


def _loss_tile(x, t, gamma, binary_targets):
    """Elementwise focal loss, algebraically identical to the PyTorch forward."""
    x = x.astype(jnp.float32)
    t = t.astype(jnp.float32)

    #   x - x*t + max(-x,0) + log(exp(-max) + exp(-x-max))
    # = x - x*t + max(-x,0) + log1p(exp(-|x|))            (1 exp + 1 log on EUP)
    ex = jnp.exp(-jnp.abs(x))                                     # EUP #1
    term = x - x * t + jnp.maximum(-x, 0.0) + jnp.log1p(ex)       # EUP #2

    # Focal weight exp(gamma * logsigmoid(z)), z = -x*(2t-1).
    # Stable sigmoid: e = exp(-|z|);  s = (z >= 0 ? 1 : e) / (1 + e).
    z = -x * (t * 2.0 - 1.0)
    if binary_targets:
        ez = ex            # t in {0,1}  =>  |z| == |x|  =>  exp(-|z|) == exp(-|x|)
    else:
        ez = jnp.exp(-jnp.abs(z))
    r = pl.reciprocal(1.0 + ez, approx=True)                      # EUP #3 (vrcp)
    s = jnp.where(z >= 0.0, r, ez * r)
    if gamma == 2.0:
        w = s * s
    else:
        w = jnp.exp(gamma * jnp.log(s))    # general gamma (not the spec default)
    return w * term


def _focal_loss_kernel(x_ref, t_ref, o_ref, *, gamma, tb, b_valid, nb,
                       binary_targets, ragged_rows):
    if not ragged_rows:
        loss = _loss_tile(x_ref[...], t_ref[...], gamma, binary_targets)
        o_ref[0] = jnp.sum(loss, axis=0, keepdims=True)
    else:
        i = pl.program_id(0)

        @pl.when(i < nb - 1)
        def _():  # steady-state tiles: no masking work at all
            loss = _loss_tile(x_ref[...], t_ref[...], gamma, binary_targets)
            o_ref[0] = jnp.sum(loss, axis=0, keepdims=True)

        @pl.when(i == nb - 1)
        def _():  # only the last batch tile can contain padded (undefined) rows
            rows = jax.lax.broadcasted_iota(jnp.int32, (tb, 1), 0) + i * tb
            rmask = rows < b_valid
            # Mask the *inputs* before the transcendentals: edge-block VMEM is
            # undefined and a NaN/Inf would survive where(mask, loss, 0).
            x = jnp.where(rmask, x_ref[...].astype(jnp.float32), 0.0)
            t = jnp.where(rmask, t_ref[...].astype(jnp.float32), 0.0)
            loss = jnp.where(rmask, _loss_tile(x, t, gamma, binary_targets), 0.0)
            o_ref[0] = jnp.sum(loss, axis=0, keepdims=True)


def focal_loss(x, target, *, gamma=GAMMA, block_b=None, binary_targets=True):
    """loss.sum(dim=1).mean() of binary focal loss on logits (PyTorch FocalLoss).

    binary_targets=True assumes t in {0,1} (reuses exp(-|x|) for the focal
    weight); pass False for soft / label-smoothed targets.
    """
    if x.shape != target.shape:
        raise ValueError("Target size must be the same as input size")
    if x.ndim != 2:
        raise ValueError("expected 2-D (batch, classes) inputs")
    B, C = x.shape
    xb = int(jnp.dtype(x.dtype).itemsize)
    tby = int(jnp.dtype(target.dtype).itemsize)

    # Sub-32-bit dtypes pack along sublanes: f32 -> 8, bf16 -> 16, int8 -> 32.
    sub_mult = 8 * (4 // min(xb, tby, 4))

    row_bytes = C * (xb + tby)          # one row of both inputs
    if block_b is None:
        # ~8 MiB x tile; cap the double-buffered pipeline (2 bufs x both
        # inputs) at ~40 MiB so it is portable to v7x (64 MiB VMEM per TC).
        tb = max(sub_mult, (8 << 20) // max(1, C * xb) // sub_mult * sub_mult)
        while tb > sub_mult and 2 * tb * row_bytes > (40 << 20):
            tb -= sub_mult
    else:
        tb = _round_up(max(1, int(block_b)), sub_mult)
    tb = min(tb, _round_up(B, sub_mult))
    nb = pl.cdiv(B, tb)
    # Give v7x's two TensorCores something to split when B is big enough.
    if nb < 2 and B >= 2 * sub_mult:
        tb = max(sub_mult, _round_up(pl.cdiv(B, 2), sub_mult))
        nb = pl.cdiv(B, tb)
    ragged_rows = (B % tb) != 0

    kernel = functools.partial(
        _focal_loss_kernel, gamma=float(gamma), tb=tb, b_valid=B, nb=nb,
        binary_targets=binary_targets, ragged_rows=ragged_rows)

    cost = pl.CostEstimate(
        flops=16 * B * C,
        transcendentals=(3 if binary_targets else 4) * B * C,
        bytes_accessed=B * C * (xb + tby) + nb * C * 4,
    )

    # 2 buffers x both input tiles + double-buffered output row + slack.
    vmem_needed = 2 * tb * row_bytes + 2 * C * 4 + (2 << 20)
    vmem_limit = int(min(48 << 20, max(vmem_needed, 16 << 20)))

    partial_sums = pl.pallas_call(
        kernel,
        out_shape=jax.ShapeDtypeStruct((nb, 1, C), jnp.float32),
        grid=(nb,),
        in_specs=[
            pl.BlockSpec((tb, C), lambda i: (i, 0)),
            pl.BlockSpec((tb, C), lambda i: (i, 0)),
        ],
        out_specs=pl.BlockSpec((1, 1, C), lambda i: (i, 0, 0)),
        compiler_params=pltpu.CompilerParams(
            dimension_semantics=("parallel",),
            vmem_limit_bytes=vmem_limit),
        cost_estimate=cost,
    )(x, target)

    # Cross-lane + cross-tile reduction and the batch mean in plain XLA,
    # dividing by the true batch size.
    return jnp.sum(partial_sums) / B


def _focal_loss_ref(x, t):
    # Pure-JAX reference mirroring the PyTorch forward exactly.
    max_val = jnp.maximum(-x, 0.0)
    loss = x - x * t + max_val + jnp.log(jnp.exp(-max_val) + jnp.exp(-x - max_val))
    invprobs = jax.nn.log_sigmoid(-x * (t * 2.0 - 1.0))
    loss = jnp.exp(invprobs * GAMMA) * loss
    return loss.sum(axis=1).mean()


if __name__ == "__main__":
    key = jax.random.PRNGKey(0)
    k1, k2, k3, k4 = jax.random.split(key, 4)

    # Case 1: lane-aligned C, bf16 binary targets (halved target HBM bytes),
    # full-block (unmasked) fast path.
    B, C = 16, 256
    x = jax.random.normal(k1, (B, C), dtype=jnp.float32) * 2.0          # logits
    t = (jax.random.uniform(k2, (B, C)) > 0.5).astype(jnp.bfloat16)     # binary targets

    out = jax.block_until_ready(focal_loss(x, t))
    ref = _focal_loss_ref(x, t.astype(jnp.float32))
    assert jnp.allclose(out, ref, rtol=1e-3, atol=1e-3), (out, ref)

    # Case 2: ragged shape — no wrapper pad; in-kernel edge-row masking.
    B2, C2 = 10, 200
    x2 = jax.random.normal(k3, (B2, C2), dtype=jnp.float32) * 2.0
    t2 = (jax.random.uniform(k4, (B2, C2)) > 0.5).astype(jnp.float32)

    out2 = jax.block_until_ready(focal_loss(x2, t2))
    ref2 = _focal_loss_ref(x2, t2)
    assert jnp.allclose(out2, ref2, rtol=1e-3, atol=1e-3), (out2, ref2)

    # Case 3: general (non-binary-rewrite) focal-weight path also compiles/matches.
    out3 = jax.block_until_ready(focal_loss(x2, t2, binary_targets=False))
    assert jnp.allclose(out3, ref2, rtol=1e-3, atol=1e-3), (out3, ref2)

    print("KERNEL_OK")
</pallas_src>

<mosaic_0001>
module attributes {stable_mosaic.version = 11 : i64} {
  func.func @_focal_loss_kernel(%arg0: i32, %arg1: memref<16x256xf32, #tpu.memory_space<vmem>>, %arg2: memref<16x256xbf16, #tpu.memory_space<vmem>>, %arg3: memref<1x1x256xf32, #tpu.memory_space<vmem>>) attributes {dimension_semantics = [#tpu.dimension_semantics<parallel>], iteration_bounds = array<i64: 1>, scalar_prefetch = 0 : i64, scratch_operands = 0 : i64, tpu.core_type = #tpu.core_type<tc>, window_params = [{transform_indices = @transform_0, window_bounds = array<i64: 16, 256>}, {transform_indices = @transform_1, window_bounds = array<i64: 16, 256>}, {transform_indices = @transform_2, window_bounds = array<i64: 1, 1, 256>}]} {
    %c0 = arith.constant 0 : index
    %c0_0 = arith.constant 0 : index
    %0 = vector.load %arg1[%c0, %c0_0] : memref<16x256xf32, #tpu.memory_space<vmem>>, vector<16x256xf32>
    %c0_1 = arith.constant 0 : index
    %c0_2 = arith.constant 0 : index
    %1 = vector.load %arg2[%c0_1, %c0_2] : memref<16x256xbf16, #tpu.memory_space<vmem>>, vector<16x256xbf16>
    %2 = arith.extf %1 : vector<16x256xbf16> to vector<16x256xf32>
    %3 = math.absf %0 : vector<16x256xf32>
    %cst = arith.constant 0.000000e+00 : f32
    %4 = vector.broadcast %cst : f32 to vector<16x256xf32>
    %5 = arith.subf %4, %3 : vector<16x256xf32>
    %6 = math.exp %5 : vector<16x256xf32>
    %7 = arith.mulf %0, %2 : vector<16x256xf32>
    %8 = arith.subf %0, %7 : vector<16x256xf32>
    %cst_3 = arith.constant 0.000000e+00 : f32
    %9 = vector.broadcast %cst_3 : f32 to vector<16x256xf32>
    %10 = arith.subf %9, %0 : vector<16x256xf32>
    %cst_4 = arith.constant 0.000000e+00 : f32
    %11 = vector.broadcast %cst_4 : f32 to vector<16x256xf32>
    %12 = arith.maximumf %10, %11 : vector<16x256xf32>
    %13 = arith.addf %8, %12 : vector<16x256xf32>
    %14 = math.log1p %6 : vector<16x256xf32>
    %15 = arith.addf %13, %14 : vector<16x256xf32>
    %cst_5 = arith.constant 0.000000e+00 : f32
    %16 = vector.broadcast %cst_5 : f32 to vector<16x256xf32>
    %17 = arith.subf %16, %0 : vector<16x256xf32>
    %cst_6 = arith.constant 2.000000e+00 : f32
    %18 = vector.broadcast %cst_6 : f32 to vector<16x256xf32>
    %19 = arith.mulf %2, %18 : vector<16x256xf32>
    %cst_7 = arith.constant 1.000000e+00 : f32
    %20 = vector.broadcast %cst_7 : f32 to vector<16x256xf32>
    %21 = arith.subf %19, %20 : vector<16x256xf32>
    %22 = arith.mulf %17, %21 : vector<16x256xf32>
    %cst_8 = arith.constant 1.000000e+00 : f32
    %23 = vector.broadcast %cst_8 : f32 to vector<16x256xf32>
    %24 = arith.addf %23, %6 : vector<16x256xf32>
    %25 = tpu.reciprocal %24 {approx = true} : vector<16x256xf32> -> vector<16x256xf32>
    %cst_9 = arith.constant 0.000000e+00 : f32
    %26 = vector.broadcast %cst_9 : f32 to vector<16x256xf32>
    %27 = arith.cmpf oge, %22, %26 : vector<16x256xf32>
    %28 = arith.mulf %6, %25 : vector<16x256xf32>
    %29 = arith.select %27, %25, %28 : vector<16x256xi1>, vector<16x256xf32>
    %30 = arith.mulf %29, %29 : vector<16x256xf32>
    %31 = arith.mulf %30, %15 : vector<16x256xf32>
    %cst_10 = arith.constant dense<0.000000e+00> : vector<256xf32>
    %32 = vector.multi_reduction <add>, %31, %cst_10 [0] : vector<16x256xf32> to vector<256xf32>
    %33 = vector.shape_cast %32 : vector<256xf32> to vector<1x256xf32>
    %c0_11 = arith.constant 0 : index
    %c0_12 = arith.constant 0 : index
    %c0_13 = arith.constant 0 : index
    %34 = vector.load %arg3[%c0_11, %c0_12, %c0_13] : memref<1x1x256xf32, #tpu.memory_space<vmem>>, vector<1x1x256xf32>
    %35 = vector.shape_cast %34 : vector<1x1x256xf32> to vector<1x256xf32>
    %36 = vector.shape_cast %33 : vector<1x256xf32> to vector<1x1x256xf32>
    tpu.vector_store %arg3[%c0_11, %c0_12, %c0_13], %36 {strides = array<i32>} : memref<1x1x256xf32, #tpu.memory_space<vmem>>, vector<1x1x256xf32>,
    return
  }
  func.func @transform_0(%arg0: i32) -> (i32, i32) {
    %c0_i32 = arith.constant 0 : i32
    %c0_i32_0 = arith.constant 0 : i32
    return %arg0, %c0_i32 : i32, i32
  }
  func.func @transform_1(%arg0: i32) -> (i32, i32) {
    %c0_i32 = arith.constant 0 : i32
    %c0_i32_0 = arith.constant 0 : i32
    return %arg0, %c0_i32 : i32, i32
  }
  func.func @transform_2(%arg0: i32) -> (i32, i32, i32) {
    %c0_i32 = arith.constant 0 : i32
    %c0_i32_0 = arith.constant 0 : i32
    %c0_i32_1 = arith.constant 0 : i32
    return %arg0, %c0_i32, %c0_i32_0 : i32, i32, i32
  }
}

</mosaic_0001>

<llo_original>
// kernel: tpu_custom_call.1
$region0: #{tpu_custom_call.1}
  #allocation0 [shape = 'u32[]', space=smem, size = 0x4, offset = 0x4, fixed_abs, tag = 'smem constant byte address 0x4 - core index']
  #allocation1 [shape = 'u32[144,128]{1,0:T(1,128)}', space=vmem, size = 0x12000, scoped, tag = 'internal scratch']
  %s0 = inlined_call_operand.hbm [shape: f32[16,256], index: 0, kind: input, shape index: {}]
  %s1 = inlined_call_operand.hbm [shape: bf16[16,256], index: 1, kind: input, shape index: {}]
  %s2 = inlined_call_operand.hbm [shape: f32[1,1,256], index: 2, kind: output, shape index: {}]
  %s3 = sld [smem:[#allocation0]]
  $region26: #{tpu_custom_call.1} parent=0
    _
  %s5 = ssub.s32 1, %s3
  %s6 = scalar_select 0, %s5, %s3
  $region1: #{tpu_custom_call.1} parent=0
    #allocation2 [shape = 'u8[16384]{0}', space=vmem, size = 0x4000, scoped, tag = 'input window, operand 0, single buffered']
    #allocation3 [shape = 's32[1]{0}', space=sflag, size = 0x4, scoped, tag = 'scoped memory for tpu_custom_call.1']
    #allocation4 [shape = 's32[1]{0}', space=sflag, size = 0x4, scoped, tag = 'scoped memory for tpu_custom_call.1']
    #allocation5 [shape = 'u8[8192]{0}', space=vmem, size = 0x2000, scoped, tag = 'input window, operand 1, single buffered']
    #allocation6 [shape = 's32[1]{0}', space=sflag, size = 0x4, scoped, tag = 'scoped memory for tpu_custom_call.1']
    #allocation7 [shape = 'u8[1024]{0}', space=vmem, size = 0x400, scoped, tag = 'output window, operand 0, single buffered']
    %7 = vsyncpa [#allocation3], 0
    %8 = vsyncpa [#allocation6], 0
    %9 = vsyncpa [#allocation4], 0
    // Predicated region
    $region2: #{tpu_custom_call.1} parent=1 // pred_check
      _
    $region3: #{tpu_custom_call.1} parent=1 // pred_check_branch
      %11 = sbr.rel (0) target = $region5
    $region4: #{tpu_custom_call.1} parent=1 // pred_region
      %s13 = ssub.s32 512, 512
      %14 = vsyncadd [#allocation3], %s13
      %s15 = sshll.u32 [#allocation2], 4
      %s16 = int_to_ptr.vmem [resolvable:$true] %s15
      %21 = dma.hbm_to_vmem [thread:$0]  %s0, 512, %s16, [#allocation3], 256, 256, 16
    $region5: #{tpu_custom_call.1} parent=1 // pred_fallthru
      _
    // Predicated region
    $region6: #{tpu_custom_call.1} parent=1 // pred_check
      _
    $region7: #{tpu_custom_call.1} parent=1 // pred_check_branch
      %23 = sbr.rel (0) target = $region9
    $region8: #{tpu_custom_call.1} parent=1 // pred_region
      %s25 = ssub.s32 256, 256
      %26 = vsyncadd [#allocation6], %s25
      %s27 = sshll.u32 [#allocation5], 4
      %s28 = int_to_ptr.vmem [resolvable:$true] %s27
      %33 = dma.hbm_to_vmem [thread:$0]  %s1, 256, %s28, [#allocation6], 128, 128, 8
    $region9: #{tpu_custom_call.1} parent=1 // pred_fallthru
      _
    // Predicated region
    $region10: #{tpu_custom_call.1} parent=1 // pred_check
      _
    $region11: #{tpu_custom_call.1} parent=1 // pred_check_branch
      %35 = sbr.rel (0) target = $region13
    $region12: #{tpu_custom_call.1} parent=1 // pred_region
      %36 = dma.done [#allocation3], 512
    $region13: #{tpu_custom_call.1} parent=1 // pred_fallthru
      _
    // Predicated region
    $region14: #{tpu_custom_call.1} parent=1 // pred_check
      _
    $region15: #{tpu_custom_call.1} parent=1 // pred_check_branch
      %38 = sbr.rel (0) target = $region17
    $region16: #{tpu_custom_call.1} parent=1 // pred_region
      %39 = dma.done [#allocation6], 256
    $region17: #{tpu_custom_call.1} parent=1 // pred_fallthru
      _
    %v40 = vld [vmem:[#allocation2] sm:$0xff]
    %v41 = vld [vmem:[#allocation2 + $0x8] sm:$0xff]
    %v42 = vld [vmem:[#allocation2 + $0x10] sm:$0xff]
    %v43 = vld [vmem:[#allocation2 + $0x18] sm:$0xff]
    %v44 = vld [vmem:[#allocation5] sm:$0xff]
    %v45 = vld [vmem:[#allocation5 + $0x8] sm:$0xff]
    %v46 = vunpack.c.l.bf16 %v44
    %v47 = vunpack.c.h.bf16 %v44
    %v48 = vunpack.c.l.bf16 %v45
    %v49 = vunpack.c.h.bf16 %v45
    %v50 = vand.u32 2147483647, %v40
    %v51 = vand.u32 2147483647, %v41
    %v52 = vand.u32 2147483647, %v42
    %v53 = vand.u32 2147483647, %v43
    %v54 = vsub.f32 0.0, %v50
    %v55 = vsub.f32 0.0, %v51
    %v56 = vsub.f32 0.0, %v52
    %v57 = vsub.f32 0.0, %v53
    %v58 = vmul.f32 %v54, 1.442695
    %v59 = vpow.pop %v58
    %v60 = vmul.f32 %v55, 1.442695
    %v61 = vpow.pop %v60
    %v62 = vmul.f32 %v56, 1.442695
    %v63 = vpow.pop %v62
    %v64 = vmul.f32 %v57, 1.442695
    %v65 = vpow.pop %v64
    %v66 = vmul.f32 %v40, %v46
    %v67 = vmul.f32 %v41, %v47
    %v68 = vmul.f32 %v42, %v48
    %v69 = vmul.f32 %v43, %v49
    %v70 = vsub.f32 %v40, %v66
    %v71 = vsub.f32 %v41, %v67
    %v72 = vsub.f32 %v42, %v68
    %v73 = vsub.f32 %v43, %v69
    %v74 = vsub.f32 0.0, %v40
    %v75 = vsub.f32 0.0, %v41
    %v76 = vsub.f32 0.0, %v42
    %v77 = vsub.f32 0.0, %v43
    %v78 = vmax.f32 %v74, 0.0
    %v79 = vmax.f32 %v75, 0.0
    %v80 = vmax.f32 %v76, 0.0
    %v81 = vmax.f32 %v77, 0.0
    %v82 = vadd.f32 %v70, %v78
    %v83 = vadd.f32 %v71, %v79
    %v84 = vadd.f32 %v72, %v80
    %v85 = vadd.f32 %v73, %v81
    %v86 = vadd.f32 %v59, 1.0
    %v87 = vlog2.pop %v86
    %v88 = vmul.f32 %v87, 0.6931472
    %v89 = vmul.f32 -0.5, %v59
    %v90 = vadd.f32 %v89, 1.0
    %v91 = vmul.f32 %v90, %v59
    %v92 = vand.u32 2147483647, %v59
    %vm93 = vcmp.lt.f32.partialorder %v92, 0.0004427343
    %v94 = vsel %vm93, %v91, %v88
    %v95 = vadd.f32 %v61, 1.0
    %v96 = vlog2.pop %v95
    %v97 = vmul.f32 %v96, 0.6931472
    %v98 = vmul.f32 -0.5, %v61
    %v99 = vadd.f32 %v98, 1.0
    %v100 = vmul.f32 %v99, %v61
    %v101 = vand.u32 2147483647, %v61
    %vm102 = vcmp.lt.f32.partialorder %v101, 0.0004427343
    %v103 = vsel %vm102, %v100, %v97
    %v104 = vadd.f32 %v63, 1.0
    %v105 = vlog2.pop %v104
    %v106 = vmul.f32 %v105, 0.6931472
    %v107 = vmul.f32 -0.5, %v63
    %v108 = vadd.f32 %v107, 1.0
    %v109 = vmul.f32 %v108, %v63
    %v110 = vand.u32 2147483647, %v63
    %vm111 = vcmp.lt.f32.partialorder %v110, 0.0004427343
    %v112 = vsel %vm111, %v109, %v106
    %v113 = vadd.f32 %v65, 1.0
    %v114 = vlog2.pop %v113
    %v115 = vmul.f32 %v114, 0.6931472
    %v116 = vmul.f32 -0.5, %v65
    %v117 = vadd.f32 %v116, 1.0
    %v118 = vmul.f32 %v117, %v65
    %v119 = vand.u32 2147483647, %v65
    %vm120 = vcmp.lt.f32.partialorder %v119, 0.0004427343
    %v121 = vsel %vm120, %v118, %v115
    %v122 = vadd.f32 %v82, %v94
    %v123 = vadd.f32 %v83, %v103
    %v124 = vadd.f32 %v84, %v112
    %v125 = vadd.f32 %v85, %v121
    %v126 = vmul.f32 %v46, 2.0
    %v127 = vmul.f32 %v47, 2.0
    %v128 = vmul.f32 %v48, 2.0
    %v129 = vmul.f32 %v49, 2.0
    %v130 = vsub.f32 %v126, 1.0
    %v131 = vsub.f32 %v127, 1.0
    %v132 = vsub.f32 %v128, 1.0
    %v133 = vsub.f32 %v129, 1.0
    %v134 = vmul.f32 %v74, %v130
    %v135 = vmul.f32 %v75, %v131
    %v136 = vmul.f32 %v76, %v132
    %v137 = vmul.f32 %v77, %v133
    %v138 = vadd.f32 %v59, 1.0
    %v139 = vadd.f32 %v61, 1.0
    %v140 = vadd.f32 %v63, 1.0
    %v141 = vadd.f32 %v65, 1.0
    %v142 = vrcp.pop %v138
    %v143 = vrcp.pop %v139
    %v144 = vrcp.pop %v140
    %v145 = vrcp.pop %v141
    %vm146 = vcmp.ge.f32.partialorder %v134, 0.0
    %vm147 = vcmp.ge.f32.partialorder %v135, 0.0
    %vm148 = vcmp.ge.f32.partialorder %v136, 0.0
    %vm149 = vcmp.ge.f32.partialorder %v137, 0.0
    %v150 = vmul.f32 %v59, %v142
    %v151 = vmul.f32 %v61, %v143
    %v152 = vmul.f32 %v63, %v144
    %v153 = vmul.f32 %v65, %v145
    %v154 = vsel %vm146, %v142, %v150
    %v155 = vsel %vm147, %v143, %v151
    %v156 = vsel %vm148, %v144, %v152
    %v157 = vsel %vm149, %v145, %v153
    %v158 = vmul.f32 %v154, %v154
    %v159 = vmul.f32 %v155, %v155
    %v160 = vmul.f32 %v156, %v156
    %v161 = vmul.f32 %v157, %v157
    %v162 = vmul.f32 %v158, %v122
    %v163 = vmul.f32 %v159, %v123
    %v164 = vmul.f32 %v160, %v124
    %v165 = vmul.f32 %v161, %v125
    %v166 = vadd.f32 %v162, %v164
    %v167 = vrot.slane %v166, 4
    %v168 = vadd.f32 %v166, %v167
    %v169 = vrot.slane %v168, 2
    %v170 = vadd.f32 %v168, %v169
    %v171 = vrot.slane %v170, 1
    %v172 = vadd.f32 %v170, %v171
    %v173 = vadd.f32 %v163, %v165
    %v174 = vrot.slane %v173, 4
    %v175 = vadd.f32 %v173, %v174
    %v176 = vrot.slane %v175, 2
    %v177 = vadd.f32 %v175, %v176
    %v178 = vrot.slane %v177, 1
    %v179 = vadd.f32 %v177, %v178
    %v182 = vcombine.low %v172, %v179
    %v184 = vunpack.c.l.s4 1966171168
    %v185 = vunpack.c.0.s8 %v184
    %v186 = vlaneseq
    %v187 = vshrl.u32 %v186, 7
    %v188 = vsub.s32 %v185, %v187
    %v189 = vrot.slane %v182, %v188
    %v191 = vunpack.c.l.s4 1966171168
    %v192 = vunpack.c.0.s8 %v191
    %v193 = vlaneseq
    %v194 = vshrl.u32 %v193, 7
    %v195 = vsub.s32 %v192, %v194
    %v196 = vrot.slane %v189, %v195
    %v198 = vlaneseq
    %vm199 = vcmp.ge.s32.totalorder %v198, 0
    %vm200 = vcmp.lt.s32.totalorder %v198, 256
    %vm201 = vmand %vm199, %vm200
    %202 = vst.msk [vmem:[#allocation7] sm:$0x3] %vm201, %v196
    // Predicated region
    $region18: #{tpu_custom_call.1} parent=1 // pred_check
      _
    $region19: #{tpu_custom_call.1} parent=1 // pred_check_branch
      %204 = sbr.rel (0) target = $region21
    $region20: #{tpu_custom_call.1} parent=1 // pred_region
      %s206 = ssub.s32 32, 32
      %207 = vsyncadd [#allocation4], %s206
      %s209 = sshll.u32 [#allocation7], 4
      %s210 = int_to_ptr.vmem [resolvable:$true] %s209
      %212 = dma.vmem_to_hbm [thread:$0]  %s210, 32, %s2, [#allocation4]
    $region21: #{tpu_custom_call.1} parent=1 // pred_fallthru
      _
    // Predicated region
    $region22: #{tpu_custom_call.1} parent=1 // pred_check
      _
    $region23: #{tpu_custom_call.1} parent=1 // pred_check_branch
      %214 = sbr.rel (0) target = $region25
    $region24: #{tpu_custom_call.1} parent=1 // pred_region
      %215 = dma.done [#allocation4], 32
    $region25: #{tpu_custom_call.1} parent=1 // pred_fallthru
      _
    %216 = vsyncpa [#allocation3], 1
    %217 = vsyncpa [#allocation6], 1
    %218 = vsyncpa [#allocation4], 1

</llo_original>
